<compile_context>
chip_gen: v5e
topology: v5e:2x2
jax: 0.10.0
libtpu: 0.0.40
codegen_flags: <defaults>
</compile_context>

<pallas_src>
import functools

import jax
import jax.numpy as jnp
from jax.experimental import pallas as pl
from jax.experimental.pallas import tpu as pltpu

LANE = 128          # channel dims padded to a multiple of this
SUBLANE_F32 = 8
SUBLANE_BF16 = 16   # bf16 sublane packing


def _round_up(x, m):
    return ((x + m - 1) // m) * m


# --------------------------------------------------------------------------
# pltpu.roll direction probe, resolved ONCE at import time (never under jit).
# We need out[i] = y[i -/+ 1]; this pins the shift convention so the conv2
# kw offsets are always correct regardless of jax version.
# --------------------------------------------------------------------------
def _probe_roll_convention() -> bool:
    """True if pltpu.roll(x, s, axis) == jnp.roll(x, s, axis) (out[i]=x[i-s])."""
    n = 8
    x = jnp.broadcast_to(jnp.arange(n, dtype=jnp.int32)[:, None], (n, LANE))

    def probe(x_ref, o_ref):
        o_ref[...] = pltpu.roll(x_ref[...], shift=1, axis=0)

    y = pl.pallas_call(
        probe, out_shape=jax.ShapeDtypeStruct((n, LANE), jnp.int32))(x)
    first = int(jax.device_get(y)[0, 0])
    if first == n - 1:
        return True
    if first == 1:
        return False
    raise RuntimeError(f"unexpected pltpu.roll behaviour (probe={first})")


_ROLL_MATCHES_JNP = _probe_roll_convention()


def _vmem_capacity_bytes() -> int:
    try:
        return int(pltpu.get_tpu_info().vmem_capacity_bytes)
    except Exception:
        return 64 * 1024 * 1024      # conservative (v7x per-TC VMEM)


# --------------------------------------------------------------------------
# Kernel
# --------------------------------------------------------------------------
def _bottleneck_kernel(x_ref, w1_ref, b1_ref, w2_ref, b2_ref, w3_ref, b3_ref,
                       o_ref, buf_ref, *, shift_m1, shift_p1):
    """One grid step: a batch tile of the Bottleneck residual block (NHWC).

    x_ref:   (B, H, W, Cp)         input tile (channels zero-padded to Cp)
    w1_ref:  (Cp, Pp)        bf16  1x1 conv (+ folded BN)
    b1_ref:  (1, Pp)         f32
    w2_ref:  (3*Pp, 3*Pp)    bf16  3x3 conv; row block = kh, col block = kw
    b2_ref:  (1, Pp)         f32
    w3_ref:  (Pp, Cop)       bf16  1x1 conv (+ folded BN)
    b3_ref:  (1, Cop)        f32
    o_ref:   (B, H, W, Cop)
    buf_ref: (B, H+2, Wp, Pp) bf16 scratch: height-padded conv2 input; data in
                                   cols [0, W); cols W and Wp-1 zeroed.
    """
    B, H, W, Cp = x_ref.shape
    _, _, Wp, Pp = buf_ref.shape
    Cop = w3_ref.shape[1]
    M = B * H * W            # matmul rows for conv1 / conv3 / residual
    Mw = B * H * Wp          # matmul rows for conv2 (width-padded)

    # ---- conv1: 1x1 (+folded BN) + ReLU.  bf16 MXU operands, f32 accumulate.
    xf = x_ref[...].reshape(M, Cp)
    h1 = jnp.dot(xf.astype(jnp.bfloat16), w1_ref[...],
                 preferred_element_type=jnp.float32) + b1_ref[...]
    h1 = jnp.maximum(h1, 0.0)

    # ---- stage the conv2 input in the bf16 padded scratch.
    # Only the border rows and the two wrap-target column pairs are zeroed
    # each step (the interior data columns are fully overwritten; the other
    # padded columns never reach a kept output).  Re-zeroing per step keeps
    # correctness independent of grid iteration order (megacore-safe).
    zrow = jnp.zeros((B, Wp, Pp), jnp.bfloat16)
    buf_ref[:, 0, :, :] = zrow
    buf_ref[:, H + 1, :, :] = zrow
    zpair = jnp.zeros((B, H, 2, Pp), jnp.bfloat16)
    buf_ref[:, 1:H + 1, W:W + 2, :] = zpair          # col W  (kw=+1 wrap)
    buf_ref[:, 1:H + 1, Wp - 2:Wp, :] = zpair        # col Wp-1 (kw=-1 wrap)
    buf_ref[:, 1:H + 1, 0:W, :] = h1.astype(jnp.bfloat16).reshape(B, H, W, Pp)

    # ---- conv2: 3x3 stride-1 pad-1 (+folded BN) + ReLU.
    # kh im2col along lanes -> one K=3*Pp matmul; the +-1 column (kw) offsets
    # are realised by two cheap XLU rolls on the summed result.  The circular
    # wraps always land in a zero column, so no masking is needed.
    rows = jnp.concatenate(
        [buf_ref[:, kh:kh + H, :, :].reshape(Mw, Pp) for kh in range(3)],
        axis=-1)                                               # (Mw, 3*Pp) bf16
    y = jnp.dot(rows, w2_ref[...], preferred_element_type=jnp.float32)
    acc = (y[:, Pp:2 * Pp]                                               # kw=1
           + pltpu.roll(y[:, 0:Pp], shift=shift_m1, axis=0)             # kw=0
           + pltpu.roll(y[:, 2 * Pp:3 * Pp], shift=shift_p1, axis=0)    # kw=2
           + b2_ref[...])
    # ReLU + width crop + bf16 cast fused into the conv3 operand.
    h2 = jnp.maximum(acc.reshape(B, H, Wp, Pp)[:, :, 0:W, :], 0.0)
    h2 = h2.reshape(M, Pp).astype(jnp.bfloat16)

    # ---- conv3: 1x1 (+folded BN), no ReLU.
    h3 = jnp.dot(h2, w3_ref[...], preferred_element_type=jnp.float32) + b3_ref[...]

    # ---- identity residual (re-read the resident x block) + final ReLU.
    res = x_ref[...].reshape(M, Cop).astype(jnp.float32)
    out = jnp.maximum(h3 + res, 0.0)
    o_ref[...] = out.reshape(B, H, W, Cop).astype(o_ref.dtype)


# --------------------------------------------------------------------------
# Wrappers
# --------------------------------------------------------------------------
def bottleneck_pallas_nhwc(x, w1f, b1f, w2f, b2f, w3f, b3f, *,
                           b_tile=None, keep_padded=False):
    """Bottleneck (stride=1, downsample=None, eval-mode BN folded), NHWC.

    x: (N, H, W, Cin) in f32 or bf16 (bf16 and/or already channel-padded input
    is accepted for chained blocks).  w*f are HWIO conv weights with BN folded
    in, b*f the folded biases.  Returns (N, H, W, Cout) in x.dtype (padded to
    the lane multiple if keep_padded=True).
    """
    N, H, W, _ = x.shape
    Cin, P = w1f.shape[2], w1f.shape[3]
    Cout = w3f.shape[3]
    assert w2f.shape == (3, 3, P, P)
    assert Cout == Cin, "identity shortcut requires in_planes == planes*expansion"
    assert W % SUBLANE_F32 == 0, "kernel assumes W is a multiple of 8"
    # TODO(synk): stride=2 / downsample-branch Bottlenecks and the rest of
    # Single_stage_module (ResNet stage chaining, bilinear Upsample units,
    # skip adds) are not implemented here; only the stride-1 identity-shortcut
    # block is.

    Cp = _round_up(Cin, LANE)         # lane-dense channel dims
    Pp = _round_up(P, LANE)
    Cop = _round_up(Cout, LANE)
    Wp = _round_up(W + 1, SUBLANE_BF16)   # >= 1 zero col; bf16 sublane packing

    if x.shape[-1] == Cin:
        xp = x if Cp == Cin else jnp.pad(x, ((0, 0), (0, 0), (0, 0), (0, Cp - Cin)))
    elif x.shape[-1] == Cp:
        xp = x                           # already channel-padded (chained blocks)
    else:
        raise ValueError(f"x last dim {x.shape[-1]} is neither Cin={Cin} nor Cp={Cp}")

    # Pack weights (bf16) / biases (f32) in kernel layout.
    w1k = jnp.zeros((Cp, Pp), jnp.float32).at[:Cin, :P].set(
        w1f.reshape(Cin, P)).astype(jnp.bfloat16)
    b1k = jnp.zeros((1, Pp), jnp.float32).at[0, :P].set(b1f)
    w2k = jnp.zeros((3 * Pp, 3 * Pp), jnp.float32)
    for kh in range(3):
        for kw in range(3):
            w2k = w2k.at[kh * Pp:kh * Pp + P, kw * Pp:kw * Pp + P].set(w2f[kh, kw])
    w2k = w2k.astype(jnp.bfloat16)
    b2k = jnp.zeros((1, Pp), jnp.float32).at[0, :P].set(b2f)
    w3k = jnp.zeros((Pp, Cop), jnp.float32).at[:P, :Cout].set(
        w3f.reshape(P, Cout)).astype(jnp.bfloat16)
    b3k = jnp.zeros((1, Cop), jnp.float32).at[0, :Cout].set(b3f)

    # ---- VMEM budgeting + batch-tile selection --------------------------
    vmem_cap = _vmem_capacity_bytes()
    act_bytes = jnp.dtype(x.dtype).itemsize

    def _step_vmem_bytes(bt):
        m, mw = bt * H * W, bt * H * Wp
        blocks = 2 * m * Cp * act_bytes + 2 * m * Cop * act_bytes   # dbl-buffered x/out
        weights = 2 * ((Cp * Pp + 9 * Pp * Pp + Pp * Cop) * 2 + (2 * Pp + Cop) * 4)
        scratch = bt * (H + 2) * Wp * Pp * 2                        # bf16 staging
        live = (m * Pp * 4                                          # h1 f32
                + mw * 3 * Pp * (2 + 4)                             # im2col bf16 + y f32
                + 2 * mw * Pp * 4                                   # acc / roll temps
                + m * (Pp * 2 + Cop * 4))                           # h2 bf16 + h3 f32
        return blocks + weights + scratch + live

    if b_tile is None:
        budget = int(0.6 * vmem_cap)
        target_rows = 1024            # fatten M to amortise per-step overhead
        b_tile = 1
        for cand in range(N, 0, -1):
            if N % cand:
                continue
            if N >= 2 and N // cand < 2:
                continue              # keep grid >= 2 (2-TC megacore on v7x)
            if cand > 1 and cand * H * W > target_rows:
                continue
            if _step_vmem_bytes(cand) > budget:
                continue
            b_tile = cand
            break
    assert N % b_tile == 0
    # TODO(synk): for very large H*W*C add a haloed row-tiled grid axis so a
    # single batch item still fits v7x's 64 MiB VMEM.
    vmem_limit = int(min(0.9 * vmem_cap, 110 * 1024 * 1024))
    vmem_limit = max(vmem_limit, 32 * 1024 * 1024)

    Mw = b_tile * H * Wp
    if _ROLL_MATCHES_JNP:
        shift_m1, shift_p1 = 1, Mw - 1      # out[i]=y[i-1] / out[i]=y[i+1]
    else:
        shift_m1, shift_p1 = Mw - 1, 1

    kernel = functools.partial(_bottleneck_kernel,
                               shift_m1=shift_m1, shift_p1=shift_p1)

    out_p = pl.pallas_call(
        kernel,
        out_shape=jax.ShapeDtypeStruct((N, H, W, Cop), x.dtype),
        grid_spec=pltpu.PrefetchScalarGridSpec(
            num_scalar_prefetch=0,
            grid=(N // b_tile,),
            in_specs=[
                pl.BlockSpec((b_tile, H, W, Cp), lambda n: (n, 0, 0, 0)),
                pl.BlockSpec((Cp, Pp), lambda n: (0, 0)),
                pl.BlockSpec((1, Pp), lambda n: (0, 0)),
                pl.BlockSpec((3 * Pp, 3 * Pp), lambda n: (0, 0)),
                pl.BlockSpec((1, Pp), lambda n: (0, 0)),
                pl.BlockSpec((Pp, Cop), lambda n: (0, 0)),
                pl.BlockSpec((1, Cop), lambda n: (0, 0)),
            ],
            out_specs=pl.BlockSpec((b_tile, H, W, Cop), lambda n: (n, 0, 0, 0)),
            scratch_shapes=[pltpu.VMEM((b_tile, H + 2, Wp, Pp), jnp.bfloat16)],
        ),
        # Batch axis is embarrassingly parallel -> megacore sharding.
        compiler_params=pltpu.CompilerParams(
            dimension_semantics=("parallel",),
            vmem_limit_bytes=vmem_limit),
    )(xp, w1k, b1k, w2k, b2k, w3k, b3k)

    if keep_padded or Cop == Cout:
        return out_p
    return out_p[..., :Cout]


def bottleneck_pallas_nchw(x_nchw, *args, **kwargs):
    """PyTorch-layout convenience wrapper (adds two HBM transpose passes);
    prefer the NHWC entry point end-to-end."""
    out = bottleneck_pallas_nhwc(jnp.transpose(x_nchw, (0, 2, 3, 1)),
                                 *args, **kwargs)
    return jnp.transpose(out, (0, 3, 1, 2))


# --------------------------------------------------------------------------
# Plain-JAX glue: BN folding + XLA reference
# --------------------------------------------------------------------------
def fold_bn(w_hwio, conv_bias, gamma, beta, mean, var, eps=1e-5):
    """Fold eval-mode BatchNorm into a conv (HWIO weight)."""
    scale = gamma / jnp.sqrt(var + eps)
    return w_hwio * scale[None, None, None, :], (conv_bias - mean) * scale + beta


def reference_nhwc(x, w1f, b1f, w2f, b2f, w3f, b3f):
    """Pure-JAX (XLA conv) reference on NHWC for correctness checking."""
    dn = ('NHWC', 'HWIO', 'NHWC')
    h = jax.lax.conv_general_dilated(x, w1f, (1, 1), 'VALID',
                                     dimension_numbers=dn) + b1f
    h = jnp.maximum(h, 0.0)
    h = jax.lax.conv_general_dilated(h, w2f, (1, 1), ((1, 1), (1, 1)),
                                     dimension_numbers=dn) + b2f
    h = jnp.maximum(h, 0.0)
    h = jax.lax.conv_general_dilated(h, w3f, (1, 1), 'VALID',
                                     dimension_numbers=dn) + b3f
    return jnp.maximum(h + x, 0.0)


# --------------------------------------------------------------------------
if __name__ == "__main__":
    # Small shapes consistent with a stride-1 Bottleneck (expansion=4,
    # downsample=None): in_planes == planes * 4 so the identity shortcut holds.
    N, in_planes, H, W = 2, 16, 16, 16
    planes = 4
    Cout = planes * 4            # == in_planes
    eps = 1e-5

    key = jax.random.PRNGKey(0)
    ks = jax.random.split(key, 10)

    w1 = 0.2 * jax.random.normal(ks[0], (1, 1, in_planes, planes), jnp.float32)
    cb1 = 0.05 * jax.random.normal(ks[1], (planes,), jnp.float32)
    w2 = 0.2 * jax.random.normal(ks[2], (3, 3, planes, planes), jnp.float32)
    cb2 = 0.05 * jax.random.normal(ks[3], (planes,), jnp.float32)
    w3 = 0.2 * jax.random.normal(ks[4], (1, 1, planes, Cout), jnp.float32)
    cb3 = 0.05 * jax.random.normal(ks[5], (Cout,), jnp.float32)

    # Eval-mode BatchNorm params / running stats, folded into the convs.
    # TODO(synk): train-mode BN (batch statistics) is not implemented.
    def bn_params(k, c):
        k1, k2, k3, k4 = jax.random.split(k, 4)
        return (1.0 + 0.1 * jax.random.normal(k1, (c,), jnp.float32),
                0.1 * jax.random.normal(k2, (c,), jnp.float32),
                0.1 * jax.random.normal(k3, (c,), jnp.float32),
                1.0 + 0.5 * jax.random.uniform(k4, (c,), jnp.float32))

    g1, be1, m1, v1 = bn_params(ks[6], planes)
    g2, be2, m2, v2 = bn_params(ks[7], planes)
    g3, be3, m3, v3 = bn_params(ks[8], Cout)
    w1f, b1f = fold_bn(w1, cb1, g1, be1, m1, v1, eps)
    w2f, b2f = fold_bn(w2, cb2, g2, be2, m2, v2, eps)
    w3f, b3f = fold_bn(w3, cb3, g3, be3, m3, v3, eps)

    # NHWC end-to-end (avoids the NCHW<->NHWC HBM transpose passes).
    x_nhwc = jax.random.normal(ks[9], (N, H, W, in_planes), jnp.float32)

    out = bottleneck_pallas_nhwc(x_nhwc, w1f, b1f, w2f, b2f, w3f, b3f)
    out = jax.block_until_ready(out)

    ref = reference_nhwc(x_nhwc, w1f, b1f, w2f, b2f, w3f, b3f)
    assert out.shape == (N, H, W, Cout)
    # bf16 MXU operands -> looser tolerance vs the f32 XLA reference.
    assert jnp.allclose(out, ref, atol=5e-2, rtol=5e-2), \
        f"max abs err = {jnp.max(jnp.abs(out - ref))}"

    # PyTorch (NCHW) layout wrapper parity.
    out_nchw = bottleneck_pallas_nchw(jnp.transpose(x_nhwc, (0, 3, 1, 2)),
                                      w1f, b1f, w2f, b2f, w3f, b3f)
    assert jnp.allclose(out_nchw, jnp.transpose(out, (0, 3, 1, 2)),
                        atol=1e-6, rtol=1e-6)

    print("KERNEL_OK")
</pallas_src>

<mosaic_0001>
module attributes {stable_mosaic.version = 11 : i64} {
  func.func @probe(%arg0: memref<8x128xi32, #tpu.memory_space<vmem>>, %arg1: memref<8x128xi32, #tpu.memory_space<vmem>>) attributes {dimension_semantics = [], scalar_prefetch = 0 : i64, scratch_operands = 0 : i64, tpu.core_type = #tpu.core_type<tc>} {
    %c0 = arith.constant 0 : index
    %c0_0 = arith.constant 0 : index
    %0 = vector.load %arg0[%c0, %c0_0] : memref<8x128xi32, #tpu.memory_space<vmem>>, vector<8x128xi32>
    %c1_i32 = arith.constant 1 : i32
    %1 = tpu.dynamic_rotate %0 by %c1_i32 dim 0 : vector<8x128xi32>, i32 -> vector<8x128xi32>
    %c0_1 = arith.constant 0 : index
    %c0_2 = arith.constant 0 : index
    %2 = vector.load %arg1[%c0_1, %c0_2] : memref<8x128xi32, #tpu.memory_space<vmem>>, vector<8x128xi32>
    tpu.vector_store %arg1[%c0_1, %c0_2], %1 {strides = array<i32>} : memref<8x128xi32, #tpu.memory_space<vmem>>, vector<8x128xi32>,
    return
  }
}

</mosaic_0001>

<llo_original>
// kernel: tpu_custom_call.1
$region0: #{tpu_custom_call.1}
  #allocation0 [shape = 'u32[]', space=smem, size = 0x4, offset = 0x4, fixed_abs, tag = 'smem constant byte address 0x4 - core index']
  #allocation1 [shape = 'u32[72,128]{1,0:T(1,128)}', space=vmem, size = 0x9000, scoped, tag = 'internal scratch']
  %s0 = inlined_call_operand.hbm [shape: s32[8,128], index: 0, kind: input, shape index: {}]
  %s1 = inlined_call_operand.hbm [shape: s32[8,128], index: 1, kind: output, shape index: {}]
  %s2 = sld [smem:[#allocation0]]
  $region18: #{tpu_custom_call.1} parent=0
    _
  %s4 = ssub.s32 1, %s2
  %s5 = scalar_select 0, %s4, %s2
  $region1: #{tpu_custom_call.1} parent=0
    #allocation2 [shape = 'u8[4096]{0}', space=vmem, size = 0x1000, scoped, tag = 'input window, operand 0, single buffered']
    #allocation3 [shape = 's32[1]{0}', space=sflag, size = 0x4, scoped, tag = 'scoped memory for tpu_custom_call.1']
    #allocation4 [shape = 's32[1]{0}', space=sflag, size = 0x4, scoped, tag = 'scoped memory for tpu_custom_call.1']
    #allocation5 [shape = 'u8[4096]{0}', space=vmem, size = 0x1000, scoped, tag = 'output window, operand 0, single buffered']
    %6 = vsyncpa [#allocation3], 0
    %7 = vsyncpa [#allocation4], 0
    // Predicated region
    $region2: #{tpu_custom_call.1} parent=1 // pred_check
      _
    $region3: #{tpu_custom_call.1} parent=1 // pred_check_branch
      %9 = sbr.rel (0) target = $region5
    $region4: #{tpu_custom_call.1} parent=1 // pred_region
      %11 = vsyncadd [#allocation3], 0
      %s13 = sshll.u32 %s0, 4
      %s14 = int_to_ptr.hbm [resolvable:$true] %s13
      %s15 = sshll.u32 [#allocation2], 4
      %s16 = int_to_ptr.vmem [resolvable:$true] %s15
      %18 = dma.hbm_to_vmem [thread:$0]  %s14, 128, %s16, [#allocation3]
    $region5: #{tpu_custom_call.1} parent=1 // pred_fallthru
      _
    // Predicated region
    $region6: #{tpu_custom_call.1} parent=1 // pred_check
      _
    $region7: #{tpu_custom_call.1} parent=1 // pred_check_branch
      %20 = sbr.rel (0) target = $region9
    $region8: #{tpu_custom_call.1} parent=1 // pred_region
      %22 = dma.done [#allocation3], 128
    $region9: #{tpu_custom_call.1} parent=1 // pred_fallthru
      _
    %v23 = vld [vmem:[#allocation2] sm:$0xff]
    %v24 = vrot.slane %v23, 7
    %25 = vst [vmem:[#allocation5] sm:$0xff] %v24
    // Predicated region
    $region10: #{tpu_custom_call.1} parent=1 // pred_check
      _
    $region11: #{tpu_custom_call.1} parent=1 // pred_check_branch
      %27 = sbr.rel (0) target = $region13
    $region12: #{tpu_custom_call.1} parent=1 // pred_region
      %29 = vsyncadd [#allocation4], 0
      %s31 = sshll.u32 [#allocation5], 4
      %s32 = int_to_ptr.vmem [resolvable:$true] %s31
      %s33 = sshll.u32 %s1, 4
      %s34 = int_to_ptr.hbm [resolvable:$true] %s33
      %36 = dma.vmem_to_hbm [thread:$0]  %s32, 128, %s34, [#allocation4]
    $region13: #{tpu_custom_call.1} parent=1 // pred_fallthru
      _
    // Predicated region
    $region14: #{tpu_custom_call.1} parent=1 // pred_check
      _
    $region15: #{tpu_custom_call.1} parent=1 // pred_check_branch
      %38 = sbr.rel (0) target = $region17
    $region16: #{tpu_custom_call.1} parent=1 // pred_region
      %40 = dma.done [#allocation4], 128
    $region17: #{tpu_custom_call.1} parent=1 // pred_fallthru
      _
    %41 = vsyncpa [#allocation3], 1
    %42 = vsyncpa [#allocation4], 1

</llo_original>
